<compile_context>
chip_gen: v5e
topology: v5e:2x2
jax: 0.10.0
libtpu: 0.0.40
codegen_flags: <defaults>
</compile_context>

<pallas_src>
import jax
import jax.numpy as jnp
from jax.experimental import pallas as pl
from jax.experimental.pallas import tpu as pltpu


def gaussian_kernel(x_ref, w_ref, b_ref, noise_ref, out_ref):
    z_dim = noise_ref.shape[-1]

    x = x_ref[...]

    # Single fused MXU matmul: [TB, in_dim] @ [in_dim, 2*z_dim] with f32 accumulation.
    pre = jnp.dot(x, w_ref[...], preferred_element_type=jnp.float32) + b_ref[...]

    mu = pre[:, :z_dim]
    var_pre = pre[:, z_dim:]

    # Numerically stable softplus: max(v, 0) + log1p(exp(-|v|))   (EUP: exp, log1p)
    var = jnp.maximum(var_pre, 0.0) + jnp.log1p(jnp.exp(-jnp.abs(var_pre)))

    # Reparameterize: z = mu + noise * sqrt(var + 1e-10)
    std = jnp.sqrt(var + jnp.float32(1e-10))
    z = mu + noise_ref[...] * std

    # Single output slab: [3, TB, z_dim] = (mu, var, z); all writes at lane offset 0.
    out_ref[0, :, :] = mu.astype(out_ref.dtype)
    out_ref[1, :, :] = var.astype(out_ref.dtype)
    out_ref[2, :, :] = z.astype(out_ref.dtype)


def gaussian_forward(x, w_mu, b_mu, w_var, b_var, noise, *, tb=64):
    """x: [B, in_dim]; w_*: [in_dim, z_dim]; b_*: [1, z_dim]; noise: [B, z_dim].

    Returns (mu, var, z), each [B, z_dim] float32.
    """
    B, in_dim = x.shape
    z_dim = w_mu.shape[1]

    # Fuse the two linear layers into one matmul.
    w_cat = jnp.concatenate([w_mu, w_var], axis=1)          # [in_dim, 2*z_dim]
    b_cat = jnp.concatenate([b_mu, b_var], axis=1)          # [1, 2*z_dim]

    # Batch tile: at least 8 rows (sublane granularity), at most B.
    tb = max(8, min(tb, B))
    nb = pl.cdiv(B, tb)
    Bp = nb * tb
    if Bp != B:
        x = jnp.pad(x, ((0, Bp - B), (0, 0)))
        noise = jnp.pad(noise, ((0, Bp - B), (0, 0)))

    out = pl.pallas_call(
        gaussian_kernel,
        out_shape=jax.ShapeDtypeStruct((3, Bp, z_dim), jnp.float32),
        grid=(nb,),
        in_specs=[
            pl.BlockSpec((tb, in_dim), lambda i: (i, 0)),          # x      (tiled on B)
            pl.BlockSpec((in_dim, 2 * z_dim), lambda i: (0, 0)),   # w_cat  (resident)
            pl.BlockSpec((1, 2 * z_dim), lambda i: (0, 0)),        # b_cat  (resident)
            pl.BlockSpec((tb, z_dim), lambda i: (i, 0)),           # noise  (tiled on B)
        ],
        out_specs=pl.BlockSpec((3, tb, z_dim), lambda i: (0, i, 0)),
        compiler_params=pltpu.CompilerParams(
            dimension_semantics=("parallel",),
        ),
    )(x, w_cat, b_cat, noise)

    mu = out[0, :B, :]
    var = out[1, :B, :]
    z = out[2, :B, :]
    return mu, var, z


if __name__ == "__main__":
    B, in_dim, z_dim = 128, 64, 16

    key = jax.random.PRNGKey(0)
    kx, kwm, kbm, kwv, kbv, kn = jax.random.split(key, 6)

    # Deterministic parameter init (PyTorch Linear default: U(-1/sqrt(in), 1/sqrt(in)))
    bound = 1.0 / float(jnp.sqrt(jnp.float32(in_dim)))
    w_mu = jax.random.uniform(kwm, (in_dim, z_dim), jnp.float32, -bound, bound)
    b_mu = jax.random.uniform(kbm, (1, z_dim), jnp.float32, -bound, bound)
    w_var = jax.random.uniform(kwv, (in_dim, z_dim), jnp.float32, -bound, bound)
    b_var = jax.random.uniform(kbv, (1, z_dim), jnp.float32, -bound, bound)

    x = jax.random.normal(kx, (B, in_dim), jnp.float32)
    # torch.randn_like(std) equivalent with a fixed seed (pass a fresh key per
    # call for fresh noise).
    noise = jax.random.normal(kn, (B, z_dim), jnp.float32)

    mu, var, z = gaussian_forward(x, w_mu, b_mu, w_var, b_var, noise, tb=64)
    jax.block_until_ready((mu, var, z))

    # Pure-JAX reference check
    mu_ref = x @ w_mu + b_mu
    var_ref = jax.nn.softplus(x @ w_var + b_var)
    z_ref = mu_ref + noise * jnp.sqrt(var_ref + 1e-10)
    assert jnp.allclose(mu, mu_ref, atol=1e-5), "mu mismatch"
    assert jnp.allclose(var, var_ref, atol=1e-5), "var mismatch"
    assert jnp.allclose(z, z_ref, atol=1e-5), "z mismatch"

    print("KERNEL_OK")
</pallas_src>

<mosaic_0001>
module attributes {stable_mosaic.version = 11 : i64} {
  func.func @gaussian_kernel(%arg0: i32, %arg1: memref<64x64xf32, #tpu.memory_space<vmem>>, %arg2: memref<64x32xf32, #tpu.memory_space<vmem>>, %arg3: memref<1x32xf32, #tpu.memory_space<vmem>>, %arg4: memref<64x16xf32, #tpu.memory_space<vmem>>, %arg5: memref<3x64x16xf32, #tpu.memory_space<vmem>>) attributes {dimension_semantics = [#tpu.dimension_semantics<parallel>], iteration_bounds = array<i64: 2>, scalar_prefetch = 0 : i64, scratch_operands = 0 : i64, tpu.core_type = #tpu.core_type<tc>, window_params = [{transform_indices = @transform_0, window_bounds = array<i64: 64, 64>}, {pipeline_mode = #tpu.pipeline_mode<synchronous>, transform_indices = @transform_1, window_bounds = array<i64: 64, 32>}, {pipeline_mode = #tpu.pipeline_mode<synchronous>, transform_indices = @transform_2, window_bounds = array<i64: 1, 32>}, {transform_indices = @transform_3, window_bounds = array<i64: 64, 16>}, {transform_indices = @transform_4, window_bounds = array<i64: 3, 64, 16>}]} {
    %c0 = arith.constant 0 : index
    %c0_0 = arith.constant 0 : index
    %0 = vector.load %arg1[%c0, %c0_0] : memref<64x64xf32, #tpu.memory_space<vmem>>, vector<64x64xf32>
    %c0_1 = arith.constant 0 : index
    %c0_2 = arith.constant 0 : index
    %1 = vector.load %arg2[%c0_1, %c0_2] : memref<64x32xf32, #tpu.memory_space<vmem>>, vector<64x32xf32>
    %cst = arith.constant dense<0.000000e+00> : vector<64x32xf32>
    %2 = tpu.matmul %0, %1, %cst {dimension_numbers = #tpu.dot_dimension_numbers<[1], [0], [0], [1], [0, 0, 1, 1], [], []>} : vector<64x64xf32>, vector<64x32xf32>, vector<64x32xf32> -> vector<64x32xf32>
    %c0_3 = arith.constant 0 : index
    %c0_4 = arith.constant 0 : index
    %3 = vector.load %arg3[%c0_3, %c0_4] : memref<1x32xf32, #tpu.memory_space<vmem>>, vector<1x32xf32>
    %4 = vector.broadcast %3 : vector<1x32xf32> to vector<64x32xf32>
    %5 = arith.addf %2, %4 : vector<64x32xf32>
    %6 = vector.extract_strided_slice %5 {offsets = [0, 0], sizes = [64, 16], strides = [1, 1]} : vector<64x32xf32> to vector<64x16xf32>
    %7 = vector.extract_strided_slice %5 {offsets = [0, 16], sizes = [64, 16], strides = [1, 1]} : vector<64x32xf32> to vector<64x16xf32>
    %cst_5 = arith.constant 0.000000e+00 : f32
    %8 = vector.broadcast %cst_5 : f32 to vector<64x16xf32>
    %9 = arith.maximumf %7, %8 : vector<64x16xf32>
    %10 = math.absf %7 : vector<64x16xf32>
    %cst_6 = arith.constant 0.000000e+00 : f32
    %11 = vector.broadcast %cst_6 : f32 to vector<64x16xf32>
    %12 = arith.subf %11, %10 : vector<64x16xf32>
    %13 = math.exp %12 : vector<64x16xf32>
    %14 = math.log1p %13 : vector<64x16xf32>
    %15 = arith.addf %9, %14 : vector<64x16xf32>
    %cst_7 = arith.constant 1.000000e-10 : f32
    %16 = vector.broadcast %cst_7 : f32 to vector<64x16xf32>
    %17 = arith.addf %15, %16 : vector<64x16xf32>
    %18 = math.sqrt %17 : vector<64x16xf32>
    %c0_8 = arith.constant 0 : index
    %c0_9 = arith.constant 0 : index
    %19 = vector.load %arg4[%c0_8, %c0_9] : memref<64x16xf32, #tpu.memory_space<vmem>>, vector<64x16xf32>
    %20 = arith.mulf %19, %18 : vector<64x16xf32>
    %21 = arith.addf %6, %20 : vector<64x16xf32>
    %c0_10 = arith.constant 0 : index
    %c0_11 = arith.constant 0 : index
    %c0_12 = arith.constant 0 : index
    %22 = vector.load %arg5[%c0_10, %c0_11, %c0_12] : memref<3x64x16xf32, #tpu.memory_space<vmem>>, vector<1x64x16xf32>
    %23 = vector.shape_cast %22 : vector<1x64x16xf32> to vector<64x16xf32>
    %24 = vector.shape_cast %6 : vector<64x16xf32> to vector<1x64x16xf32>
    tpu.vector_store %arg5[%c0_10, %c0_11, %c0_12], %24 {strides = array<i32>} : memref<3x64x16xf32, #tpu.memory_space<vmem>>, vector<1x64x16xf32>,
    %c1 = arith.constant 1 : index
    %c0_13 = arith.constant 0 : index
    %c0_14 = arith.constant 0 : index
    %25 = vector.load %arg5[%c1, %c0_13, %c0_14] : memref<3x64x16xf32, #tpu.memory_space<vmem>>, vector<1x64x16xf32>
    %26 = vector.shape_cast %25 : vector<1x64x16xf32> to vector<64x16xf32>
    %27 = vector.shape_cast %15 : vector<64x16xf32> to vector<1x64x16xf32>
    tpu.vector_store %arg5[%c1, %c0_13, %c0_14], %27 {strides = array<i32>} : memref<3x64x16xf32, #tpu.memory_space<vmem>>, vector<1x64x16xf32>,
    %c2 = arith.constant 2 : index
    %c0_15 = arith.constant 0 : index
    %c0_16 = arith.constant 0 : index
    %28 = vector.load %arg5[%c2, %c0_15, %c0_16] : memref<3x64x16xf32, #tpu.memory_space<vmem>>, vector<1x64x16xf32>
    %29 = vector.shape_cast %28 : vector<1x64x16xf32> to vector<64x16xf32>
    %30 = vector.shape_cast %21 : vector<64x16xf32> to vector<1x64x16xf32>
    tpu.vector_store %arg5[%c2, %c0_15, %c0_16], %30 {strides = array<i32>} : memref<3x64x16xf32, #tpu.memory_space<vmem>>, vector<1x64x16xf32>,
    return
  }
  func.func @transform_0(%arg0: i32) -> (i32, i32) {
    %c0_i32 = arith.constant 0 : i32
    %c0_i32_0 = arith.constant 0 : i32
    return %arg0, %c0_i32 : i32, i32
  }
  func.func @transform_1(%arg0: i32) -> (i32, i32) {
    %c0_i32 = arith.constant 0 : i32
    %c0_i32_0 = arith.constant 0 : i32
    %c0_i32_1 = arith.constant 0 : i32
    return %c0_i32, %c0_i32_0 : i32, i32
  }
  func.func @transform_2(%arg0: i32) -> (i32, i32) {
    %c0_i32 = arith.constant 0 : i32
    %c0_i32_0 = arith.constant 0 : i32
    %c0_i32_1 = arith.constant 0 : i32
    return %c0_i32, %c0_i32_0 : i32, i32
  }
  func.func @transform_3(%arg0: i32) -> (i32, i32) {
    %c0_i32 = arith.constant 0 : i32
    %c0_i32_0 = arith.constant 0 : i32
    return %arg0, %c0_i32 : i32, i32
  }
  func.func @transform_4(%arg0: i32) -> (i32, i32, i32) {
    %c0_i32 = arith.constant 0 : i32
    %c0_i32_0 = arith.constant 0 : i32
    %c0_i32_1 = arith.constant 0 : i32
    return %c0_i32, %arg0, %c0_i32_0 : i32, i32, i32
  }
}

</mosaic_0001>

<llo_original>
// kernel: tpu_custom_call.1
$region0: #{tpu_custom_call.1}
  #allocation0 [shape = 'u32[]', space=smem, size = 0x4, offset = 0x4, fixed_abs, tag = 'smem constant byte address 0x4 - core index']
  #allocation1 [shape = 'u32[72,128]{1,0:T(1,128)}', space=vmem, size = 0x9000, scoped, tag = 'internal scratch']
  %s0 = inlined_call_operand.vmem [shape: f32[128,64], index: 0, kind: input, shape index: {}]
  %s1 = inlined_call_operand.vmem [shape: f32[64,32], index: 1, kind: input, shape index: {}]
  %s2 = inlined_call_operand.vmem [shape: f32[1,32], index: 2, kind: input, shape index: {}]
  %s3 = inlined_call_operand.vmem [shape: f32[128,16], index: 3, kind: input, shape index: {}]
  %s4 = inlined_call_operand.vmem [shape: f32[3,128,16], index: 4, kind: output, shape index: {}]
  %s5 = sld [smem:[#allocation0]]
  $region83: #{tpu_custom_call.1} parent=0
    _
  %s7 = ssub.s32 1, %s5
  %s8 = scalar_select 0, %s7, %s5
  $region1: #{tpu_custom_call.1} parent=0
    #allocation2 [shape = 'u8[196608]{0}', space=vmem, size = 0x30000, scoped, tag = 'output window, operand 0']
    loop: start=0, step=1, limit=4
    $region2: #{tpu_custom_call.1} parent=1 // loop_pre_header
      _
    $region3: #{tpu_custom_call.1} parent=1 // loop_header
      %s10 = sphi 0, %s14
      %p11 = scmp.ge.s32.totalorder %s10, 4
      %s20 = sphi 0, %s22
      %s23 = sphi 0, %s20
      %s24 = sphi 0, %s23
      %s40 = sphi 0, %s24
      %s44 = sphi 0, %s44
      %s46 = sphi 0, %s44
      %s47 = sphi 0, %s46
      %s61 = sphi 0, %s47
      %s65 = sphi 0, %s65
      %s67 = sphi 0, %s65
      %s68 = sphi 0, %s67
      %s82 = sphi 0, %s68
      %s88 = sphi 0, %s90
      %s91 = sphi 0, %s88
      %s92 = sphi 0, %s91
      %s108 = sphi 0, %s92
      %s114 = sphi 0, %s116
      %s117 = sphi 0, %s114
      %s118 = sphi 0, %s117
      %s134 = sphi 0, %s118
    $region4: #{tpu_custom_call.1} parent=1 // loop_header_branch
      %13 = sbr.rel (%p11) target = $region8
    $region5: #{tpu_custom_call.1} parent=1 // loop_body
      %s15 = ssub.s32 %s10, 1
      %s16 = ssub.s32 %s10, 2
      %s17 = sadd.s32 %s10, 1
      %s18 = ssub.s32 %s10, %s17
      %p19 = scmp.eq.s32.totalorder %s18, 0
      %s21 = sadd.s32 %s20, 1
      %s22 = scalar_select %p19, %s20, %s21
      %p25 = pneg %p19
      %p26 = scmp.eq.s32.totalorder %s10, 1
      %p27 = por %p25, %p26
      %p28 = scmp.ne.s32.totalorder %s20, %s23
      %p29 = scmp.eq.s32.totalorder %s10, 0
      %p30 = por %p28, %p29
      %p31 = scmp.ne.s32.totalorder %s20, %s23
      %p32 = scmp.eq.s32.totalorder %s15, 1
      %p33 = por %p31, %p32
      %p34 = scmp.ne.s32.totalorder %s23, %s24
      %p35 = scmp.eq.s32.totalorder %s15, 0
      %p36 = por %p34, %p35
      %p37 = scmp.ne.s32.totalorder %s23, %s24
      %p38 = scmp.eq.s32.totalorder %s16, 1
      %p39 = por %p37, %p38
      %p41 = scmp.ne.s32.totalorder %s24, %s40
      %p42 = scmp.eq.s32.totalorder %s16, 0
      %p43 = por %p41, %p42
      %s45 = sadd.s32 %s44, 1
      %p48 = scmp.eq.s32.totalorder %s10, 1
      %p49 = scmp.ne.s32.totalorder %s44, %s46
      %p50 = scmp.eq.s32.totalorder %s10, 0
      %p51 = por %p49, %p50
      %p52 = scmp.ne.s32.totalorder %s44, %s46
      %p53 = scmp.eq.s32.totalorder %s15, 1
      %p54 = por %p52, %p53
      %p55 = scmp.ne.s32.totalorder %s46, %s47
      %p56 = scmp.eq.s32.totalorder %s15, 0
      %p57 = por %p55, %p56
      %p58 = scmp.ne.s32.totalorder %s46, %s47
      %p59 = scmp.eq.s32.totalorder %s16, 1
      %p60 = por %p58, %p59
      %p62 = scmp.ne.s32.totalorder %s47, %s61
      %p63 = scmp.eq.s32.totalorder %s16, 0
      %p64 = por %p62, %p63
      %s66 = sadd.s32 %s65, 1
      %p69 = scmp.eq.s32.totalorder %s10, 1
      %p70 = scmp.ne.s32.totalorder %s65, %s67
      %p71 = scmp.eq.s32.totalorder %s10, 0
      %p72 = por %p70, %p71
      %p73 = scmp.ne.s32.totalorder %s65, %s67
      %p74 = scmp.eq.s32.totalorder %s15, 1
      %p75 = por %p73, %p74
      %p76 = scmp.ne.s32.totalorder %s67, %s68
      %p77 = scmp.eq.s32.totalorder %s15, 0
      %p78 = por %p76, %p77
      %p79 = scmp.ne.s32.totalorder %s67, %s68
      %p80 = scmp.eq.s32.totalorder %s16, 1
      %p81 = por %p79, %p80
      %p83 = scmp.ne.s32.totalorder %s68, %s82
      %p84 = scmp.eq.s32.totalorder %s16, 0
      %p85 = por %p83, %p84
      %s86 = ssub.s32 %s10, %s17
      %p87 = scmp.eq.s32.totalorder %s86, 0
      %s89 = sadd.s32 %s88, 1
      %s90 = scalar_select %p87, %s88, %s89
      %p93 = pneg %p87
      %p94 = scmp.eq.s32.totalorder %s10, 1
      %p95 = por %p93, %p94
      %p96 = scmp.ne.s32.totalorder %s88, %s91
      %p97 = scmp.eq.s32.totalorder %s10, 0
      %p98 = por %p96, %p97
      %p99 = scmp.ne.s32.totalorder %s88, %s91
      %p100 = scmp.eq.s32.totalorder %s15, 1
      %p101 = por %p99, %p100
      %p102 = scmp.ne.s32.totalorder %s91, %s92
      %p103 = scmp.eq.s32.totalorder %s15, 0
      %p104 = por %p102, %p103
      %p105 = scmp.ne.s32.totalorder %s91, %s92
      %p106 = scmp.eq.s32.totalorder %s16, 1
      %p107 = por %p105, %p106
      %p109 = scmp.ne.s32.totalorder %s92, %s108
      %p110 = scmp.eq.s32.totalorder %s16, 0
      %p111 = por %p109, %p110
      %s112 = ssub.s32 %s10, %s17
      %p113 = scmp.eq.s32.totalorder %s112, 0
      %s115 = sadd.s32 %s114, 1
      %s116 = scalar_select %p113, %s114, %s115
      %p119 = pneg %p113
      %p120 = scmp.eq.s32.totalorder %s10, 1
      %p121 = por %p119, %p120
      %p122 = scmp.ne.s32.totalorder %s114, %s117
      %p123 = scmp.eq.s32.totalorder %s10, 0
      %p124 = por %p122, %p123
      %p125 = scmp.ne.s32.totalorder %s114, %s117
      %p126 = scmp.eq.s32.totalorder %s15, 1
      %p127 = por %p125, %p126
      %p128 = scmp.ne.s32.totalorder %s117, %s118
      %p129 = scmp.eq.s32.totalorder %s15, 0
      %p130 = por %p128, %p129
      %p131 = scmp.ne.s32.totalorder %s117, %s118
      %p132 = scmp.eq.s32.totalorder %s16, 1
      %p133 = por %p131, %p132
      %p135 = scmp.ne.s32.totalorder %s118, %s134
      %p136 = scmp.eq.s32.totalorder %s16, 0
      %p137 = por %p135, %p136
      %p138 = scmp.le.s32.totalorder 1, %s10
      %p139 = scmp.lt.s32.totalorder %s10, 3
      %p140 = pnand %p138, %p139
      %p141 = pneg %p140
      // Predicated region
      $region9: #{tpu_custom_call.1} parent=5 // pred_check
        _
      $region10: #{tpu_custom_call.1} parent=5 // pred_check_branch
        %143 = sbr.rel (%p140) target = $region12
      $region11: #{tpu_custom_call.1} parent=5 // pred_region
        %s144 = ssub.s32 %s10, 1
        // Predicated region
        $region13: #{tpu_custom_call.1} parent=11 // pred_check
          %p145 = pneg %p57
        $region14: #{tpu_custom_call.1} parent=11 // pred_check_branch
          %147 = sbr.rel (%p145) target = $region16
        $region15: #{tpu_custom_call.1} parent=11 // pred_region
          _
        $region16: #{tpu_custom_call.1} parent=11 // pred_fallthru
          _
        // Predicated region
        $region17: #{tpu_custom_call.1} parent=11 // pred_check
          %p148 = pneg %p78
        $region18: #{tpu_custom_call.1} parent=11 // pred_check_branch
          %150 = sbr.rel (%p148) target = $region20
        $region19: #{tpu_custom_call.1} parent=11 // pred_region
          _
        $region20: #{tpu_custom_call.1} parent=11 // pred_fallthru
          _
      $region12: #{tpu_custom_call.1} parent=5 // pred_fallthru
        _
      %p151 = scmp.lt.s32.totalorder %s10, 2
      // Predicated region
      $region21: #{tpu_custom_call.1} parent=5 // pred_check
        %p152 = pneg %p151
      $region22: #{tpu_custom_call.1} parent=5 // pred_check_branch
        %154 = sbr.rel (%p152) target = $region24
      $region23: #{tpu_custom_call.1} parent=5 // pred_region
        // Predicated region
        $region25: #{tpu_custom_call.1} parent=23 // pred_check
          %p155 = pneg %p30
        $region26: #{tpu_custom_call.1} parent=23 // pred_check_branch
          %157 = sbr.rel (%p155) target = $region28
        $region27: #{tpu_custom_call.1} parent=23 // pred_region
          %s158 = smul.u32 8, %s10
          %p159 = scmp.lt.s32.totalorder %s158, 15
          %s160 = scalar_select %p159, %s158, 15
          %s161 = smul.addr %s160, 8
          %s162 = scalar_lea.vmem %s0, %s161
          %s163 = smul.u32 8, %s10
        $region28: #{tpu_custom_call.1} parent=23 // pred_fallthru
          _
        // Predicated region
        $region29: #{tpu_custom_call.1} parent=23 // pred_check
          %p164 = pneg %p98
        $region30: #{tpu_custom_call.1} parent=23 // pred_check_branch
          %166 = sbr.rel (%p164) target = $region32
        $region31: #{tpu_custom_call.1} parent=23 // pred_region
          %s167 = smul.u32 8, %s10
          %p168 = scmp.lt.s32.totalorder %s167, 15
          %s169 = scalar_select %p168, %s167, 15
          %s170 = smul.addr %s169, 8
          %s171 = scalar_lea.vmem %s3, %s170
          %s172 = smul.u32 8, %s10
        $region32: #{tpu_custom_call.1} parent=23 // pred_fallthru
          _
      $region24: #{tpu_custom_call.1} parent=5 // pred_fallthru
        _
      %p173 = scmp.le.s32.totalorder 1, %s10
      %p174 = scmp.lt.s32.totalorder %s10, 3
      %p175 = pnand %p173, %p174
      %p176 = pneg %p175
      // Predicated region
      $region33: #{tpu_custom_call.1} parent=5 // pred_check
        _
      $region34: #{tpu_custom_call.1} parent=5 // pred_check_branch
        %178 = sbr.rel (%p175) target = $region36
      $region35: #{tpu_custom_call.1} parent=5 // pred_region
        %s179 = ssub.s32 %s10, 1
        %s180 = smul.u32 8, %s15
        %p181 = scmp.lt.s32.totalorder %s180, 15
        %s182 = scalar_select %p181, %s180, 15
        %s183 = smul.addr %s182, 8
        %s184 = scalar_lea.vmem %s0, %s183
        %p185 = pneg %p36
        %p186 = pneg %p33
        %p187 = pneg %p57
        %p188 = pneg %p54
        %p189 = pneg %p78
        %p190 = pneg %p75
        %s191 = smul.u32 8, %s15
        %p192 = scmp.lt.s32.totalorder %s191, 15
        %s193 = scalar_select %p192, %s191, 15
        %s194 = smul.addr %s193, 8
        %s195 = scalar_lea.vmem %s3, %s194
        %p196 = pneg %p104
        %p197 = pneg %p101
        %p198 = pneg %p130
        %p199 = pneg %p127
        %s200 = sand.u32 %s117, 1
        %s201 = sand.u32 %s117, 1
        %s202 = smul.addr %s201, 192
        %s203 = scalar_lea.vmem [#allocation2], %s202
        %s204 = smul.u32 8, %s15
        %p205 = scmp.lt.s32.totalorder %s204, 15
        %s206 = scalar_select %p205, %s204, 15
        %s207 = smul.addr %s206, 8
        %s208 = scalar_lea.vmem %s0, %s207
        %s209 = smul.u32 8, %s15
        %s210 = smul.u32 8, %s15
        %p211 = scmp.lt.s32.totalorder %s210, 15
        %s212 = scalar_select %p211, %s210, 15
        %s213 = smul.addr %s212, 8
        %s214 = scalar_lea.vmem %s3, %s213
        %s215 = smul.u32 8, %s15
        %s216 = smul.u32 8, %s15
        %v217 = vld [vmem:[%s208] sm:$0xff]
        %v218 = vld [vmem:[%s208 + $0x8] sm:$0xff]
        %v219 = vld [vmem:[%s208 + $0x10] sm:$0xff]
        %v220 = vld [vmem:[%s208 + $0x18] sm:$0xff]
        %v221 = vld [vmem:[%s208 + $0x20] sm:$0xff]
        %v222 = vld [vmem:[%s208 + $0x28] sm:$0xff]
        %v223 = vld [vmem:[%s208 + $0x30] sm:$0xff]
        %v224 = vld [vmem:[%s208 + $0x38] sm:$0xff]
        %v225 = vld [vmem:[%s1] sm:$0xff]
        %v226 = vld [vmem:[%s1 + $0x8] sm:$0xff]
        %v227 = vld [vmem:[%s1 + $0x10] sm:$0xff]
        %v228 = vld [vmem:[%s1 + $0x18] sm:$0xff]
        %v229 = vld [vmem:[%s1 + $0x20] sm:$0xff]
        %v230 = vld [vmem:[%s1 + $0x28] sm:$0xff]
        %v231 = vld [vmem:[%s1 + $0x30] sm:$0xff]
        %v232 = vld [vmem:[%s1 + $0x38] sm:$0xff]
        %v233 = vld [vmem:[%s2] sm:$0x1]
        %v235 = vperm.slane %v233, 0
        %vm237 = vcmask 523264
        %v239 = vsel %vm237, %v217, 0
        %v242 = vsel %vm237, %v218, 0
        %v245 = vsel %vm237, %v219, 0
        %v248 = vsel %vm237, %v220, 0
        %v251 = vsel %vm237, %v221, 0
        %v254 = vsel %vm237, %v222, 0
        %v257 = vsel %vm237, %v223, 0
        %v260 = vsel %vm237, %v224, 0
        %262 = vmatpush.msra.mxu0 0.0
        %263 = vmatpush.msra.mxu0 0.0
        %264 = vmatpush.msra.mxu0 0.0
        %265 = vmatpush.msra.mxu0 0.0
        %266 = vmatpush.msra.mxu0 0.0
        %267 = vmatpush.msra.mxu0 0.0
        %268 = vmatpush.msra.mxu0 0.0
        %269 = vmatpush.msra.mxu0 0.0
        %270 = vmatpush.msra.mxu0 %v232
        %271 = vmatpush.msra.mxu0 %v231
        %272 = vmatpush.msra.mxu0 %v230
        %273 = vmatpush.msra.mxu0 %v229
        %274 = vmatpush.msra.mxu0 %v228
        %275 = vmatpush.msra.mxu0 %v227
        %276 = vmatpush.msra.mxu0 %v226
        %277 = vmatpush.msra.mxu0 %v225
        %278 = vmatmul.f32.gmra.mxu0 %v239
        %v279 = vpop.f32.mrf.mxu0
        %v280 = vadd.f32 %v235, %v279
        %281 = vmatmul.f32.gmra.mxu0 %v242
        %v282 = vpop.f32.mrf.mxu0
        %v283 = vadd.f32 %v235, %v282
        %284 = vmatmul.f32.gmra.mxu0 %v245
        %v285 = vpop.f32.mrf.mxu0
        %v286 = vadd.f32 %v235, %v285
        %287 = vmatmul.f32.gmra.mxu0 %v248
        %v288 = vpop.f32.mrf.mxu0
        %v289 = vadd.f32 %v235, %v288
        %290 = vmatmul.f32.gmra.mxu0 %v251
        %v291 = vpop.f32.mrf.mxu0
        %v292 = vadd.f32 %v235, %v291
        %293 = vmatmul.f32.gmra.mxu0 %v254
        %v294 = vpop.f32.mrf.mxu0
        %v295 = vadd.f32 %v235, %v294
        %296 = vmatmul.f32.gmra.mxu0 %v257
        %v297 = vpop.f32.mrf.mxu0
        %v298 = vadd.f32 %v235, %v297
        %299 = vmatmul.f32.gmra.mxu0 %v260
        %v300 = vpop.f32.mrf.mxu0
        %v301 = vadd.f32 %v235, %v300
        %302 = vdwg.mxu0
        %v303 = vmax.f32 %v280, 0.0
        %v304 = vmax.f32 %v283, 0.0
        %v305 = vmax.f32 %v286, 0.0
        %v306 = vmax.f32 %v289, 0.0
        %v307 = vmax.f32 %v292, 0.0
        %v308 = vmax.f32 %v295, 0.0
        %v309 = vmax.f32 %v298, 0.0
        %v310 = vmax.f32 %v301, 0.0
        %v311 = vand.u32 2147483647, %v280
        %v312 = vand.u32 2147483647, %v283
        %v313 = vand.u32 2147483647, %v286
        %v314 = vand.u32 2147483647, %v289
        %v315 = vand.u32 2147483647, %v292
        %v316 = vand.u32 2147483647, %v295
        %v317 = vand.u32 2147483647, %v298
        %v318 = vand.u32 2147483647, %v301
        %v319 = vsub.f32 0.0, %v311
        %v320 = vsub.f32 0.0, %v312
        %v321 = vsub.f32 0.0, %v313
        %v322 = vsub.f32 0.0, %v314
        %v323 = vsub.f32 0.0, %v315
        %v324 = vsub.f32 0.0, %v316
        %v325 = vsub.f32 0.0, %v317
        %v326 = vsub.f32 0.0, %v318
        %v327 = vmul.f32 %v319, 1.442695
        %v328 = vpow.pop %v327
        %v329 = vmul.f32 %v320, 1.442695
        %v330 = vpow.pop %v329
        %v331 = vmul.f32 %v321, 1.442695
        %v332 = vpow.pop %v331
        %v333 = vmul.f32 %v322, 1.442695
        %v334 = vpow.pop %v333
        %v335 = vmul.f32 %v323, 1.442695
        %v336 = vpow.pop %v335
        %v337 = vmul.f32 %v324, 1.442695
        %v338 = vpow.pop %v337
        %v339 = vmul.f32 %v325, 1.442695
        %v340 = vpow.pop %v339
        %v341 = vmul.f32 %v326, 1.442695
        %v342 = vpow.pop %v341
        %v343 = vadd.f32 %v328, 1.0
        %v344 = vlog2.pop %v343
        %v345 = vmul.f32 %v344, 0.6931472
        %v346 = vmul.f32 -0.5, %v328
        %v347 = vadd.f32 %v346, 1.0
        %v348 = vmul.f32 %v347, %v328
        %v349 = vand.u32 2147483647, %v328
        %vm350 = vcmp.lt.f32.partialorder %v349, 0.0004427343
        %v351 = vsel %vm350, %v348, %v345
        %v352 = vadd.f32 %v330, 1.0
        %v353 = vlog2.pop %v352
        %v354 = vmul.f32 %v353, 0.6931472
        %v355 = vmul.f32 -0.5, %v330
        %v356 = vadd.f32 %v355, 1.0
        %v357 = vmul.f32 %v356, %v330
        %v358 = vand.u32 2147483647, %v330
        %vm359 = vcmp.lt.f32.partialorder %v358, 0.0004427343
        %v360 = vsel %vm359, %v357, %v354
        %v361 = vadd.f32 %v332, 1.0
        %v362 = vlog2.pop %v361
        %v363 = vmul.f32 %v362, 0.6931472
        %v364 = vmul.f32 -0.5, %v332
        %v365 = vadd.f32 %v364, 1.0
        %v366 = vmul.f32 %v365, %v332
        %v367 = vand.u32 2147483647, %v332
        %vm368 = vcmp.lt.f32.partialorder %v367, 0.0004427343
        %v369 = vsel %vm368, %v366, %v363
        %v370 = vadd.f32 %v334, 1.0
        %v371 = vlog2.pop %v370
        %v372 = vmul.f32 %v371, 0.6931472
        %v373 = vmul.f32 -0.5, %v334
        %v374 = vadd.f32 %v373, 1.0
        %v375 = vmul.f32 %v374, %v334
        %v376 = vand.u32 2147483647, %v334
        %vm377 = vcmp.lt.f32.partialorder %v376, 0.0004427343
        %v378 = vsel %vm377, %v375, %v372
        %v379 = vadd.f32 %v336, 1.0
        %v380 = vlog2.pop %v379
        %v381 = vmul.f32 %v380, 0.6931472
        %v382 = vmul.f32 -0.5, %v336
        %v383 = vadd.f32 %v382, 1.0
        %v384 = vmul.f32 %v383, %v336
        %v385 = vand.u32 2147483647, %v336
        %vm386 = vcmp.lt.f32.partialorder %v385, 0.0004427343
        %v387 = vsel %vm386, %v384, %v381
        %v388 = vadd.f32 %v338, 1.0
        %v389 = vlog2.pop %v388
        %v390 = vmul.f32 %v389, 0.6931472
        %v391 = vmul.f32 -0.5, %v338
        %v392 = vadd.f32 %v391, 1.0
        %v393 = vmul.f32 %v392, %v338
        %v394 = vand.u32 2147483647, %v338
        %vm395 = vcmp.lt.f32.partialorder %v394, 0.0004427343
        %v396 = vsel %vm395, %v393, %v390
        %v397 = vadd.f32 %v340, 1.0
        %v398 = vlog2.pop %v397
        %v399 = vmul.f32 %v398, 0.6931472
        %v400 = vmul.f32 -0.5, %v340
        %v401 = vadd.f32 %v400, 1.0
        %v402 = vmul.f32 %v401, %v340
        %v403 = vand.u32 2147483647, %v340
        %vm404 = vcmp.lt.f32.partialorder %v403, 0.0004427343
        %v405 = vsel %vm404, %v402, %v399
        %v406 = vadd.f32 %v342, 1.0
        %v407 = vlog2.pop %v406
        %v408 = vmul.f32 %v407, 0.6931472
        %v409 = vmul.f32 -0.5, %v342
        %v410 = vadd.f32 %v409, 1.0
        %v411 = vmul.f32 %v410, %v342
        %v412 = vand.u32 2147483647, %v342
        %vm413 = vcmp.lt.f32.partialorder %v412, 0.0004427343
        %v414 = vsel %vm413, %v411, %v408
        %v415 = vadd.f32 %v303, %v351
        %v416 = vadd.f32 %v304, %v360
        %v417 = vadd.f32 %v305, %v369
        %v418 = vadd.f32 %v306, %v378
        %v419 = vadd.f32 %v307, %v387
        %v420 = vadd.f32 %v308, %v396
        %v421 = vadd.f32 %v309, %v405
        %v422 = vadd.f32 %v310, %v414
        %v423 = vadd.f32 %v415, 1e-10
        %v424 = vadd.f32 %v416, 1e-10
        %v425 = vadd.f32 %v417, 1e-10
        %v426 = vadd.f32 %v418, 1e-10
        %v427 = vadd.f32 %v419, 1e-10
        %v428 = vadd.f32 %v420, 1e-10
        %v429 = vadd.f32 %v421, 1e-10
        %v430 = vadd.f32 %v422, 1e-10
        %v431 = vrsqrt.pop %v423
        %v432 = vmul.f32 %v431, %v423
        %v433 = vmul.f32 %v432, %v431
        %v434 = vmul.f32 0.5, %v433
        %v435 = vsub.f32 1.5, %v434
        %v436 = vmul.f32 %v431, %v435
        %v437 = vmul.f32 %v423, %v436
        %vm438 = vcmp.eq.f32.partialorder %v423, inf
        %v439 = vsel %vm438, %v423, %v437
        %vm440 = vcmp.eq.f32.partialorder %v423, 0.0
        %v441 = vand.u32 %v423, 2147483648
        %v442 = vsel %vm440, %v441, %v439
        %v443 = vrsqrt.pop %v424
        %v444 = vmul.f32 %v443, %v424
        %v445 = vmul.f32 %v444, %v443
        %v446 = vmul.f32 0.5, %v445
        %v447 = vsub.f32 1.5, %v446
        %v448 = vmul.f32 %v443, %v447
        %v449 = vmul.f32 %v424, %v448
        %vm450 = vcmp.eq.f32.partialorder %v424, inf
        %v451 = vsel %vm450, %v424, %v449
        %vm452 = vcmp.eq.f32.partialorder %v424, 0.0
        %v453 = vand.u32 %v424, 2147483648
        %v454 = vsel %vm452, %v453, %v451
        %v455 = vrsqrt.pop %v425
        %v456 = vmul.f32 %v455, %v425
        %v457 = vmul.f32 %v456, %v455
        %v458 = vmul.f32 0.5, %v457
        %v459 = vsub.f32 1.5, %v458
        %v460 = vmul.f32 %v455, %v459
        %v461 = vmul.f32 %v425, %v460
        %vm462 = vcmp.eq.f32.partialorder %v425, inf
        %v463 = vsel %vm462, %v425, %v461
        %vm464 = vcmp.eq.f32.partialorder %v425, 0.0
        %v465 = vand.u32 %v425, 2147483648
        %v466 = vsel %vm464, %v465, %v463
        %v467 = vrsqrt.pop %v426
        %v468 = vmul.f32 %v467, %v426
        %v469 = vmul.f32 %v468, %v467
        %v470 = vmul.f32 0.5, %v469
        %v471 = vsub.f32 1.5, %v470
        %v472 = vmul.f32 %v467, %v471
        %v473 = vmul.f32 %v426, %v472
        %vm474 = vcmp.eq.f32.partialorder %v426, inf
        %v475 = vsel %vm474, %v426, %v473
        %vm476 = vcmp.eq.f32.partialorder %v426, 0.0
        %v477 = vand.u32 %v426, 2147483648
        %v478 = vsel %vm476, %v477, %v475
        %v479 = vrsqrt.pop %v427
        %v480 = vmul.f32 %v479, %v427
        %v481 = vmul.f32 %v480, %v479
        %v482 = vmul.f32 0.5, %v481
        %v483 = vsub.f32 1.5, %v482
        %v484 = vmul.f32 %v479, %v483
        %v485 = vmul.f32 %v427, %v484
        %vm486 = vcmp.eq.f32.partialorder %v427, inf
        %v487 = vsel %vm486, %v427, %v485
        %vm488 = vcmp.eq.f32.partialorder %v427, 0.0
        %v489 = vand.u32 %v427, 2147483648
        %v490 = vsel %vm488, %v489, %v487
        %v491 = vrsqrt.pop %v428
        %v492 = vmul.f32 %v491, %v428
        %v493 = vmul.f32 %v492, %v491
        %v494 = vmul.f32 0.5, %v493
        %v495 = vsub.f32 1.5, %v494
        %v496 = vmul.f32 %v491, %v495
        %v497 = vmul.f32 %v428, %v496
        %vm498 = vcmp.eq.f32.partialorder %v428, inf
        %v499 = vsel %vm498, %v428, %v497
        %vm500 = vcmp.eq.f32.partialorder %v428, 0.0
        %v501 = vand.u32 %v428, 2147483648
        %v502 = vsel %vm500, %v501, %v499
        %v503 = vrsqrt.pop %v429
        %v504 = vmul.f32 %v503, %v429
        %v505 = vmul.f32 %v504, %v503
        %v506 = vmul.f32 0.5, %v505
        %v507 = vsub.f32 1.5, %v506
        %v508 = vmul.f32 %v503, %v507
        %v509 = vmul.f32 %v429, %v508
        %vm510 = vcmp.eq.f32.partialorder %v429, inf
        %v511 = vsel %vm510, %v429, %v509
        %vm512 = vcmp.eq.f32.partialorder %v429, 0.0
        %v513 = vand.u32 %v429, 2147483648
        %v514 = vsel %vm512, %v513, %v511
        %v515 = vrsqrt.pop %v430
        %v516 = vmul.f32 %v515, %v430
        %v517 = vmul.f32 %v516, %v515
        %v518 = vmul.f32 0.5, %v517
        %v519 = vsub.f32 1.5, %v518
        %v520 = vmul.f32 %v515, %v519
        %v521 = vmul.f32 %v430, %v520
        %vm522 = vcmp.eq.f32.partialorder %v430, inf
        %v523 = vsel %vm522, %v430, %v521
        %vm524 = vcmp.eq.f32.partialorder %v430, 0.0
        %v525 = vand.u32 %v430, 2147483648
        %v526 = vsel %vm524, %v525, %v523
        %v527 = vld [vmem:[%s214] sm:$0xff]
        %v528 = vld [vmem:[%s214 + $0x8] sm:$0xff]
        %v529 = vld [vmem:[%s214 + $0x10] sm:$0xff]
        %v530 = vld [vmem:[%s214 + $0x18] sm:$0xff]
        %v531 = vld [vmem:[%s214 + $0x20] sm:$0xff]
        %v532 = vld [vmem:[%s214 + $0x28] sm:$0xff]
        %v533 = vld [vmem:[%s214 + $0x30] sm:$0xff]
        %v534 = vld [vmem:[%s214 + $0x38] sm:$0xff]
        %543 = vrot.lane.b32.xlu0 %v442, 112
        %v544 = vpop.permute.xlu0 %543
        %545 = vrot.lane.b32.xlu0 %v454, 112
        %v546 = vpop.permute.xlu0 %545
        %547 = vrot.lane.b32.xlu0 %v466, 112
        %v548 = vpop.permute.xlu0 %547
        %549 = vrot.lane.b32.xlu0 %v478, 112
        %v550 = vpop.permute.xlu0 %549
        %551 = vrot.lane.b32.xlu0 %v490, 112
        %v552 = vpop.permute.xlu0 %551
        %553 = vrot.lane.b32.xlu0 %v502, 112
        %v554 = vpop.permute.xlu0 %553
        %555 = vrot.lane.b32.xlu0 %v514, 112
        %v556 = vpop.permute.xlu0 %555
        %557 = vrot.lane.b32.xlu0 %v526, 112
        %v558 = vpop.permute.xlu0 %557
        %v567 = vmul.f32 %v527, %v544
        %v568 = vmul.f32 %v528, %v546
        %v569 = vmul.f32 %v529, %v548
        %v570 = vmul.f32 %v530, %v550
        %v571 = vmul.f32 %v531, %v552
        %v572 = vmul.f32 %v532, %v554
        %v573 = vmul.f32 %v533, %v556
        %v574 = vmul.f32 %v534, %v558
        %v575 = vadd.f32 %v280, %v567
        %v576 = vadd.f32 %v283, %v568
        %v577 = vadd.f32 %v286, %v569
        %v578 = vadd.f32 %v289, %v570
        %v579 = vadd.f32 %v292, %v571
        %v580 = vadd.f32 %v295, %v572
        %v581 = vadd.f32 %v298, %v573
        %v582 = vadd.f32 %v301, %v574
        %vm583 = vcmask 130048
        %584 = vst.msk [vmem:[%s203] sm:$0xff] %vm583, %v280
        %585 = vst.msk [vmem:[%s203 + $0x8] sm:$0xff] %vm583, %v283
        %586 = vst.msk [vmem:[%s203 + $0x10] sm:$0xff] %vm583, %v286
        %587 = vst.msk [vmem:[%s203 + $0x18] sm:$0xff] %vm583, %v289
        %588 = vst.msk [vmem:[%s203 + $0x20] sm:$0xff] %vm583, %v292
        %589 = vst.msk [vmem:[%s203 + $0x28] sm:$0xff] %vm583, %v295
        %590 = vst.msk [vmem:[%s203 + $0x30] sm:$0xff] %vm583, %v298
        %591 = vst.msk [vmem:[%s203 + $0x38] sm:$0xff] %vm583, %v301
        %600 = vrot.lane.b32.xlu0 %v415, 112
        %v601 = vpop.permute.xlu0 %600
        %602 = vrot.lane.b32.xlu0 %v416, 112
        %v603 = vpop.permute.xlu0 %602
        %604 = vrot.lane.b32.xlu0 %v417, 112
        %v605 = vpop.permute.xlu0 %604
        %606 = vrot.lane.b32.xlu0 %v418, 112
        %v607 = vpop.permute.xlu0 %606
        %608 = vrot.lane.b32.xlu0 %v419, 112
        %v609 = vpop.permute.xlu0 %608
        %610 = vrot.lane.b32.xlu0 %v420, 112
        %v611 = vpop.permute.xlu0 %610
        %612 = vrot.lane.b32.xlu0 %v421, 112
        %v613 = vpop.permute.xlu0 %612
        %614 = vrot.lane.b32.xlu0 %v422, 112
        %v615 = vpop.permute.xlu0 %614
        %s624 = scalar_lea.vmem %s203, 64 [#allocation2]
        %625 = vst.msk [vmem:[%s624] sm:$0xff] %vm583, %v601
        %626 = vst.msk [vmem:[%s624 + $0x8] sm:$0xff] %vm583, %v603
        %627 = vst.msk [vmem:[%s624 + $0x10] sm:$0xff] %vm583, %v605
        %628 = vst.msk [vmem:[%s624 + $0x18] sm:$0xff] %vm583, %v607
        %629 = vst.msk [vmem:[%s624 + $0x20] sm:$0xff] %vm583, %v609
        %630 = vst.msk [vmem:[%s624 + $0x28] sm:$0xff] %vm583, %v611
        %631 = vst.msk [vmem:[%s624 + $0x30] sm:$0xff] %vm583, %v613
        %632 = vst.msk [vmem:[%s624 + $0x38] sm:$0xff] %vm583, %v615
        %s633 = scalar_lea.vmem %s203, 128 [#allocation2]
        %634 = vst.msk [vmem:[%s633] sm:$0xff] %vm583, %v575
        %635 = vst.msk [vmem:[%s633 + $0x8] sm:$0xff] %vm583, %v576
        %636 = vst.msk [vmem:[%s633 + $0x10] sm:$0xff] %vm583, %v577
        %637 = vst.msk [vmem:[%s633 + $0x18] sm:$0xff] %vm583, %v578
        %638 = vst.msk [vmem:[%s633 + $0x20] sm:$0xff] %vm583, %v579
        %639 = vst.msk [vmem:[%s633 + $0x28] sm:$0xff] %vm583, %v580
        %640 = vst.msk [vmem:[%s633 + $0x30] sm:$0xff] %vm583, %v581
        %641 = vst.msk [vmem:[%s633 + $0x38] sm:$0xff] %vm583, %v582
        %s642 = sand.u32 %s117, 1
        %s643 = sand.u32 %s117, 1
        %s644 = smul.addr %s643, 192
        %s645 = scalar_lea.vmem [#allocation2], %s644
        // Predicated region
        $region37: #{tpu_custom_call.1} parent=35 // pred_check
          %p646 = pneg %p127
        $region38: #{tpu_custom_call.1} parent=35 // pred_check_branch
          %648 = sbr.rel (%p646) target = $region40
        $region39: #{tpu_custom_call.1} parent=35 // pred_region
          %s649 = smul.u32 8, %s15
          %s650 = smul.addr %s649, 8
          %s651 = scalar_lea.vmem %s4, %s650
          // Predicated region
          $region41: #{tpu_custom_call.1} parent=39 // pred_check
            _
          $region42: #{tpu_custom_call.1} parent=39 // pred_check_branch
            %653 = sbr.rel (0) target = $region44
          $region43: #{tpu_custom_call.1} parent=39 // pred_region
            // Predicated region
            $region45: #{tpu_custom_call.1} parent=43 // pred_check
              _
            $region46: #{tpu_custom_call.1} parent=43 // pred_check_branch
              %655 = sbr.rel (0) target = $region48
            $region47: #{tpu_custom_call.1} parent=43 // pred_region
              // Predicated region
              $region60: #{tpu_custom_call.1} parent=47 // pred_check
                _
              $region61: #{tpu_custom_call.1} parent=47 // pred_check_branch
                %717 = sbr.rel (0) target = $region63
              $region62: #{tpu_custom_call.1} parent=47 // pred_region
                loop: start=0, step=1, limit=1
                $region64: #{tpu_custom_call.1} parent=62 // loop_pre_header
                  _
                $region65: #{tpu_custom_call.1} parent=62 // loop_header
                  %s719 = sphi 0, %s723
                  %p720 = scmp.ge.s32.totalorder %s719, 1
                  %s724 = sphi %s645, %s645
                  %s725 = sphi %s651, %s651
                $region66: #{tpu_custom_call.1} parent=62 // loop_header_branch
                  %722 = sbr.rel (%p720) target = $region70
                $region67: #{tpu_custom_call.1} parent=62 // loop_body
                  %v726 = vld [vmem:[%s724] sm:$0xff]
                  %727 = vst [vmem:[%s725] sm:$0xff] %v726
                  %v728 = vld [vmem:[%s724 + $0x8] sm:$0xff]
                  %729 = vst [vmem:[%s725 + $0x8] sm:$0xff] %v728
                  %v730 = vld [vmem:[%s724 + $0x10] sm:$0xff]
                  %731 = vst [vmem:[%s725 + $0x10] sm:$0xff] %v730
                  %v732 = vld [vmem:[%s724 + $0x18] sm:$0xff]
                  %733 = vst [vmem:[%s725 + $0x18] sm:$0xff] %v732
                  %v734 = vld [vmem:[%s724 + $0x20] sm:$0xff]
                  %735 = vst [vmem:[%s725 + $0x20] sm:$0xff] %v734
                  %v736 = vld [vmem:[%s724 + $0x28] sm:$0xff]
                  %737 = vst [vmem:[%s725 + $0x28] sm:$0xff] %v736
                  %v738 = vld [vmem:[%s724 + $0x30] sm:$0xff]
                  %739 = vst [vmem:[%s725 + $0x30] sm:$0xff] %v738
                  %v740 = vld [vmem:[%s724 + $0x38] sm:$0xff]
                  %741 = vst [vmem:[%s725 + $0x38] sm:$0xff] %v740
                  %v742 = vld [vmem:[%s724 + $0x40] sm:$0xff]
                  %743 = vst [vmem:[%s725 + $0x80] sm:$0xff] %v742
                  %v744 = vld [vmem:[%s724 + $0x48] sm:$0xff]
                  %745 = vst [vmem:[%s725 + $0x88] sm:$0xff] %v744
                  %v746 = vld [vmem:[%s724 + $0x50] sm:$0xff]
                  %747 = vst [vmem:[%s725 + $0x90] sm:$0xff] %v746
                  %v748 = vld [vmem:[%s724 + $0x58] sm:$0xff]
                  %749 = vst [vmem:[%s725 + $0x98] sm:$0xff] %v748
                  %v750 = vld [vmem:[%s724 + $0x60] sm:$0xff]
                  %751 = vst [vmem:[%s725 + $0xa0] sm:$0xff] %v750
                  %v752 = vld [vmem:[%s724 + $0x68] sm:$0xff]
                  %753 = vst [vmem:[%s725 + $0xa8] sm:$0xff] %v752
                  %v754 = vld [vmem:[%s724 + $0x70] sm:$0xff]
                  %755 = vst [vmem:[%s725 + $0xb0] sm:$0xff] %v754
                  %v756 = vld [vmem:[%s724 + $0x78] sm:$0xff]
                  %757 = vst [vmem:[%s725 + $0xb8] sm:$0xff] %v756
                  %v758 = vld [vmem:[%s724 + $0x80] sm:$0xff]
                  %759 = vst [vmem:[%s725 + $0x100] sm:$0xff] %v758
                  %v760 = vld [vmem:[%s724 + $0x88] sm:$0xff]
                  %761 = vst [vmem:[%s725 + $0x108] sm:$0xff] %v760
                  %v762 = vld [vmem:[%s724 + $0x90] sm:$0xff]
                  %763 = vst [vmem:[%s725 + $0x110] sm:$0xff] %v762
                  %v764 = vld [vmem:[%s724 + $0x98] sm:$0xff]
                  %765 = vst [vmem:[%s725 + $0x118] sm:$0xff] %v764
                  %v766 = vld [vmem:[%s724 + $0xa0] sm:$0xff]
                  %767 = vst [vmem:[%s725 + $0x120] sm:$0xff] %v766
                  %v768 = vld [vmem:[%s724 + $0xa8] sm:$0xff]
                  %769 = vst [vmem:[%s725 + $0x128] sm:$0xff] %v768
                  %v770 = vld [vmem:[%s724 + $0xb0] sm:$0xff]
                  %771 = vst [vmem:[%s725 + $0x130] sm:$0xff] %v770
                  %v772 = vld [vmem:[%s724 + $0xb8] sm:$0xff]
                  %773 = vst [vmem:[%s725 + $0x138] sm:$0xff] %v772
                $region68: #{tpu_custom_call.1} parent=62 // loop_footer
                  %s723 = sadd.s32 1, %s719
                $region69: #{tpu_custom_call.1} parent=62 // loop_footer_branch
                  %718 = sbr.rel target = $region65
                $region70: #{tpu_custom_call.1} parent=62 // loop_exit
                  _
              $region63: #{tpu_custom_call.1} parent=47 // pred_fallthru
                _
              // Predicated region
              $region71: #{tpu_custom_call.1} parent=47 // pred_check
                _
              $region72: #{tpu_custom_call.1} parent=47 // pred_check_branch
                %775 = sbr.rel target = $region74
              $region73: #{tpu_custom_call.1} parent=47 // pred_region
                _
              $region74: #{tpu_custom_call.1} parent=47 // pred_fallthru
                _
            $region48: #{tpu_custom_call.1} parent=43 // pred_fallthru
              _
            // Predicated region
            $region49: #{tpu_custom_call.1} parent=43 // pred_check
              _
            $region50: #{tpu_custom_call.1} parent=43 // pred_check_branch
              %657 = sbr.rel target = $region52
            $region51: #{tpu_custom_call.1} parent=43 // pred_region
              %s659 = ssub.s32 256, 1
              loop: start=0, step=1, limit=1
              $region53: #{tpu_custom_call.1} parent=51 // loop_pre_header
                _
              $region54: #{tpu_custom_call.1} parent=51 // loop_header
                %s661 = sphi 0, %s665
                %p662 = scmp.ge.s32.totalorder %s661, 1
                %s666 = sphi %s645, %s645
                %s667 = sphi %s651, %s651
              $region55: #{tpu_custom_call.1} parent=51 // loop_header_branch
                %664 = sbr.rel (%p662) target = $region59
              $region56: #{tpu_custom_call.1} parent=51 // loop_body
                %v668 = vld [vmem:[%s666] sm:%s659]
                %669 = vst [vmem:[%s667] sm:%s659] %v668
                %v670 = vld [vmem:[%s666 + $0x8] sm:%s659]
                %671 = vst [vmem:[%s667 + $0x8] sm:%s659] %v670
                %v672 = vld [vmem:[%s666 + $0x10] sm:%s659]
                %673 = vst [vmem:[%s667 + $0x10] sm:%s659] %v672
                %v674 = vld [vmem:[%s666 + $0x18] sm:%s659]
                %675 = vst [vmem:[%s667 + $0x18] sm:%s659] %v674
                %v676 = vld [vmem:[%s666 + $0x20] sm:%s659]
                %677 = vst [vmem:[%s667 + $0x20] sm:%s659] %v676
                %v678 = vld [vmem:[%s666 + $0x28] sm:%s659]
                %679 = vst [vmem:[%s667 + $0x28] sm:%s659] %v678
                %v680 = vld [vmem:[%s666 + $0x30] sm:%s659]
                %681 = vst [vmem:[%s667 + $0x30] sm:%s659] %v680
                %v682 = vld [vmem:[%s666 + $0x38] sm:%s659]
                %683 = vst [vmem:[%s667 + $0x38] sm:%s659] %v682
                %v684 = vld [vmem:[%s666 + $0x40] sm:%s659]
                %685 = vst [vmem:[%s667 + $0x80] sm:%s659] %v684
                %v686 = vld [vmem:[%s666 + $0x48] sm:%s659]
                %687 = vst [vmem:[%s667 + $0x88] sm:%s659] %v686
                %v688 = vld [vmem:[%s666 + $0x50] sm:%s659]
                %689 = vst [vmem:[%s667 + $0x90] sm:%s659] %v688
                %v690 = vld [vmem:[%s666 + $0x58] sm:%s659]
                %691 = vst [vmem:[%s667 + $0x98] sm:%s659] %v690
                %v692 = vld [vmem:[%s666 + $0x60] sm:%s659]
                %693 = vst [vmem:[%s667 + $0xa0] sm:%s659] %v692
                %v694 = vld [vmem:[%s666 + $0x68] sm:%s659]
                %695 = vst [vmem:[%s667 + $0xa8] sm:%s659] %v694
                %v696 = vld [vmem:[%s666 + $0x70] sm:%s659]
                %697 = vst [vmem:[%s667 + $0xb0] sm:%s659] %v696
                %v698 = vld [vmem:[%s666 + $0x78] sm:%s659]
                %699 = vst [vmem:[%s667 + $0xb8] sm:%s659] %v698
                %v700 = vld [vmem:[%s666 + $0x80] sm:%s659]
                %701 = vst [vmem:[%s667 + $0x100] sm:%s659] %v700
                %v702 = vld [vmem:[%s666 + $0x88] sm:%s659]
                %703 = vst [vmem:[%s667 + $0x108] sm:%s659] %v702
                %v704 = vld [vmem:[%s666 + $0x90] sm:%s659]
                %705 = vst [vmem:[%s667 + $0x110] sm:%s659] %v704
                %v706 = vld [vmem:[%s666 + $0x98] sm:%s659]
                %707 = vst [vmem:[%s667 + $0x118] sm:%s659] %v706
                %v708 = vld [vmem:[%s666 + $0xa0] sm:%s659]
                %709 = vst [vmem:[%s667 + $0x120] sm:%s659] %v708
                %v710 = vld [vmem:[%s666 + $0xa8] sm:%s659]
                %711 = vst [vmem:[%s667 + $0x128] sm:%s659] %v710
                %v712 = vld [vmem:[%s666 + $0xb0] sm:%s659]
                %713 = vst [vmem:[%s667 + $0x130] sm:%s659] %v712
                %v714 = vld [vmem:[%s666 + $0xb8] sm:%s659]
                %715 = vst [vmem:[%s667 + $0x138] sm:%s659] %v714
              $region57: #{tpu_custom_call.1} parent=51 // loop_footer
                %s665 = sadd.s32 1, %s661
              $region58: #{tpu_custom_call.1} parent=51 // loop_footer_branch
                %660 = sbr.rel target = $region54
              $region59: #{tpu_custom_call.1} parent=51 // loop_exit
                _
            $region52: #{tpu_custom_call.1} parent=43 // pred_fallthru
              _
          $region44: #{tpu_custom_call.1} parent=39 // pred_fallthru
            _
          %776 = vnop
        $region40: #{tpu_custom_call.1} parent=35 // pred_fallthru
          _
      $region36: #{tpu_custom_call.1} parent=5 // pred_fallthru
        _
      %p777 = scmp.le.s32.totalorder 2, %s10
      // Predicated region
      $region75: #{tpu_custom_call.1} parent=5 // pred_check
        %p778 = pneg %p777
      $region76: #{tpu_custom_call.1} parent=5 // pred_check_branch
        %780 = sbr.rel (%p778) target = $region78
      $region77: #{tpu_custom_call.1} parent=5 // pred_region
        %s781 = ssub.s32 %s10, 2
        // Predicated region
        $region79: #{tpu_custom_call.1} parent=77 // pred_check
          %p782 = pneg %p133
        $region80: #{tpu_custom_call.1} parent=77 // pred_check_branch
          %784 = sbr.rel (%p782) target = $region82
        $region81: #{tpu_custom_call.1} parent=77 // pred_region
          %s785 = sand.u32 %s118, 1
          %s786 = sand.u32 %s118, 1
          %s787 = smul.addr %s786, 192
          %s788 = scalar_lea.vmem [#allocation2], %s787
        $region82: #{tpu_custom_call.1} parent=77 // pred_fallthru
          _
      $region78: #{tpu_custom_call.1} parent=5 // pred_fallthru
        _
    $region6: #{tpu_custom_call.1} parent=1 // loop_footer
      %s14 = sadd.s32 1, %s10
    $region7: #{tpu_custom_call.1} parent=1 // loop_footer_branch
      %9 = sbr.rel target = $region3
    $region8: #{tpu_custom_call.1} parent=1 // loop_exit
      _

</llo_original>
